<compile_context>
chip_gen: v5e
topology: v5e:2x2
jax: 0.10.0
libtpu: 0.0.40
codegen_flags: <defaults>
</compile_context>

<pallas_src>
import functools
import numpy as np

import jax
import jax.numpy as jnp
from jax import lax
from jax.experimental import pallas as pl
from jax.experimental.pallas import tpu as pltpu

LANE = 128  # lane (last-dim) padding for every kernel operand


def _round_up(x, m):
    return ((x + m - 1) // m) * m


# ----------------------------------------------------------------------------
# Pallas kernel
# ----------------------------------------------------------------------------
def _sem_loss_kernel(n_obs, lam_ref, lamt_ref, psi_ref, theta_ref, s_ref, loss_ref):
    """loss = logdet(Sigma) + trace(S @ inv(Sigma)),  Sigma = lam psi lam^T + theta.

    Shapes (zero-padded):
      lam_ref   : (OBS_SUB, LANE)   [n_obs, n_lat]
      lamt_ref  : (LANE, LANE)      [n_lat, n_obs]   (transposed in the wrapper)
      psi_ref   : (LANE, LANE)      already symmetrized
      theta_ref : (OBS_SUB, LANE)   already abs + symmetrized
      s_ref     : (OBS_SUB, LANE)   sample covariance
    """
    lam = lam_ref[...]

    # Implied covariance (CFA path): Sigma = Lambda psi Lambda^T + theta (MXU matmuls).
    # Exact-arithmetic symmetric, so the reference's (sigma + sigma.T)/2 is skipped
    # (float32 asymmetry is far below the 5e-3 tolerance).
    lp = jnp.dot(lam, psi_ref[...], preferred_element_type=jnp.float32)
    sigma = jnp.dot(lp, lamt_ref[...], preferred_element_type=jnp.float32) + theta_ref[...]

    obs_sub, lane = sigma.shape
    col_iota = lax.broadcasted_iota(jnp.int32, (1, lane), 1)      # (1, LANE)
    row_iota = lax.broadcasted_iota(jnp.int32, (obs_sub, 1), 0)   # (OBS_SUB, 1)

    # In-place Gauss-Jordan inversion (no pivoting; Sigma is SPD so diagonal
    # pivots are positive) accumulating logdet = sum(log(pivots)).  Only the
    # n_obs real pivots are swept; the zero padding block stays identically
    # zero and never contributes to logdet, the inverse, or the trace.
    # n_obs is a static Python int -> fully unrolled, static slices everywhere.
    # TODO(synk): no pivot guard -- a non-SPD Sigma yields NaN/-inf from log
    # instead of the slogdet-style handling of the reference.
    a = sigma
    logdet = jnp.zeros((1, 1), jnp.float32)
    for k in range(n_obs):
        row_raw = a[k:k + 1, :]                    # (1, LANE)   A[k, :]
        pivot = row_raw[:, k:k + 1]                # (1, 1)      A[k, k]
        logdet = logdet + jnp.log(pivot)
        inv_p = pl.reciprocal(pivot, approx=False)                  # EUP slot
        row_k = jnp.where(col_iota == k, inv_p, row_raw * inv_p)    # new row k
        col_k = jnp.where(row_iota == k, 0.0, a[:, k:k + 1])        # A[:, k], entry k zeroed
        a = jnp.where(col_iota == k, 0.0, a) - col_k * row_k
        a = jnp.where(row_iota == k, row_k, a)

    # trace(S @ Sigma^{-1}) == sum(S * Sigma^{-1}) (both symmetric up to fp error).
    # S is loaded only here, after the sweep, to keep it out of the loop's live set.
    trace_term = jnp.sum(s_ref[...] * a, keepdims=True)
    loss_ref[...] = logdet + trace_term


def _pallas_sem_loss(lam_pad, lamt_pad, psi_pad, theta_pad, s_pad, n_obs):
    kernel = functools.partial(_sem_loss_kernel, n_obs)
    out = pl.pallas_call(
        kernel,
        out_shape=jax.ShapeDtypeStruct((1, 1), jnp.float32),
        in_specs=[pl.BlockSpec(memory_space=pltpu.MemorySpace.VMEM)] * 5,
        out_specs=pl.BlockSpec(memory_space=pltpu.MemorySpace.VMEM),
    )(lam_pad, lamt_pad, psi_pad, theta_pad, s_pad)
    return out[0, 0]


def _pad_to(x, rows, cols):
    x = jnp.asarray(x, jnp.float32)
    return jnp.pad(x, ((0, rows - x.shape[0]), (0, cols - x.shape[1])))


def _make_forward_fn(masks, fixed, sample_covariance, n_obs, n_lat):
    """Build a single jitted forward: masking, sym/abs, padding, kernel, unstable."""
    assert n_obs <= LANE and n_lat <= LANE, "model exceeds single-tile kernel limits"
    obs_sub = max(8, _round_up(n_obs, 8))
    masks_j = {k: jnp.asarray(v) for k, v in masks.items()}
    fixed_j = {k: jnp.asarray(v, jnp.float32) for k, v in fixed.items()}
    s_pad = _pad_to(np.asarray(sample_covariance, np.float32), obs_sub, LANE)

    @jax.jit
    def fwd(lam_raw, psi_raw, theta_raw):
        # SEM.get() semantics: where(mask, fixed, param); theta -> abs;
        # psi/theta -> symmetrize.  Done on tiny parameter-shaped matrices
        # outside the kernel (rectangular kernel tiles can't take square .T).
        lam = jnp.where(masks_j['lambda_y'], fixed_j['lambda_y'], lam_raw)
        psi = jnp.where(masks_j['psi'], fixed_j['psi'], psi_raw)
        theta = jnp.where(masks_j['theta'], fixed_j['theta'], theta_raw)
        psi = (psi + psi.T) * 0.5
        theta = jnp.abs(theta)
        theta = (theta + theta.T) * 0.5

        lam_pad = _pad_to(lam, obs_sub, LANE)        # (8, 128)
        lamt_pad = _pad_to(lam.T, LANE, LANE)        # (128, 128)
        psi_pad = _pad_to(psi, LANE, LANE)           # (128, 128)  K-dim of first matmul
        theta_pad = _pad_to(theta, obs_sub, LANE)    # (8, 128)

        loss = _pallas_sem_loss(lam_pad, lamt_pad, psi_pad, theta_pad, s_pad, n_obs)
        unstable = (loss < 0).astype(jnp.int32)      # stays on device
        return loss, unstable

    return fwd


# ----------------------------------------------------------------------------
# Module setup (ported from the PyTorch helpers; pure python/numpy glue).
# ----------------------------------------------------------------------------
def _symmetric_dict(d):
    for (i, j), c in list(d.items()):
        d[j, i] = c
    return d


def _exclusive_dicts(dict_a, dict_b):
    for key, value in dict_a.items():
        if value == 0:
            continue
        dict_b[key] = 0
    return dict_b


def _convert_indices(dictionary, shape, mapping):
    mask = np.ones(shape, dtype=bool)
    fixed = np.zeros(shape, dtype=np.float64)
    for key, constant in dictionary.items():
        if isinstance(key, tuple):
            key = (mapping[key[0]], mapping[key[1]])
        else:
            key = mapping[key]
        if not constant == constant:        # NaN -> free parameter
            mask[key] = False
        else:
            fixed[key] = constant
    return mask, fixed


def _default_settings(lambda_y, beta, psi, theta, alpha, nu, latent, observed):
    if lambda_y is None:
        lambda_y = {}
    if beta is None:
        beta = {}
    if psi is None:
        psi = {}
    if theta is None:
        theta = {}
    if alpha is None:
        alpha = {name: 0.0 for name in latent}
    if nu is None:
        nu = {}
    theta = _symmetric_dict(theta)
    psi = _exclusive_dicts(beta, psi)
    beta = _exclusive_dicts(psi, beta)
    psi = _symmetric_dict(psi)
    for name in latent:
        psi.setdefault((name, name), 1.0)
    for name in observed:
        theta.setdefault((name, name), float('nan'))
        nu.setdefault(name, float('nan'))
    return lambda_y, beta, psi, theta, alpha, nu


def _get_initialized_parameter(data, n_observed, n_latent, biased=False):
    scale = 1.0
    n = data.shape[0]
    if biased:
        scale = (n - 1.0) / n
    cov = np.cov(data, rowvar=False, ddof=1)          # pandas .cov() is unbiased
    mean = data.mean(axis=0)
    return {
        'lambda_y': np.ones((n_observed, n_latent), dtype=np.float64),
        'beta': np.zeros((n_latent, n_latent), dtype=np.float64),
        'psi': np.eye(n_latent, dtype=np.float64),
        'theta': np.clip(np.abs(cov) * scale / 2.0 * np.eye(n_observed), 0.1, None),
        'alpha': np.zeros((n_latent, 1), dtype=np.float64),
        'nu': mean[:, None].astype(np.float64),
    }


class SEMPallas:
    """Forward-pass-only port of the PyTorch SEM module (ML / CFA case)."""

    def __init__(self, observed, latent, data, lambda_y=None, beta=None,
                 psi=None, theta=None, nu=None, alpha=None, biased_cov=True):
        assert observed and latent and data is not None
        self.fiml = alpha is not None or nu is not None or np.isnan(data).any()
        # TODO(synk): FIML (missing-pattern) branch with per-pattern logdet/inverse
        # and dynamic index_select is not implemented in the kernel.
        assert not self.fiml, "FIML path not implemented"

        lambda_y, beta, psi, theta, alpha, nu = _default_settings(
            lambda_y, beta, psi, theta, alpha, nu, latent, observed)

        self.observed, self.latent = list(observed), list(latent)
        n_observed, n_latent = len(observed), len(latent)
        self.n_observed = n_observed
        mapping = {x: i for i, x in enumerate(observed)}
        mapping.update({x: i for i, x in enumerate(latent)})

        sample_covariance = np.cov(data, rowvar=False, ddof=1)
        if biased_cov:
            samples = data.shape[0]
            sample_covariance = sample_covariance * (samples - 1.0) / samples
        self.sample_covariance = sample_covariance

        self.variables = ['lambda_y', 'beta', 'psi', 'theta']
        params = _get_initialized_parameter(data, n_observed, n_latent, biased=biased_cov)
        self.params = {k: v for k, v in params.items() if k in self.variables}

        self.free_parameters = {}
        self.masks, self.fixed = {}, {}
        self._init_fixed(mapping, {'lambda_y': lambda_y, 'beta': beta,
                                   'psi': psi, 'theta': theta})

        self.cfa = self.free_parameters['beta'] == 0
        # TODO(synk): non-CFA path (inverse of (I - beta) inside implied_sigma_mu)
        # not implemented in the kernel.
        assert self.cfa, "non-CFA path not implemented"

        # Single jitted forward: masking + sym/abs + padding + Pallas kernel.
        self._forward_fn = _make_forward_fn(
            self.masks, self.fixed, self.sample_covariance, n_observed, n_latent)

    def _init_fixed(self, mapping, kwargs):
        for name, fixed in kwargs.items():
            if name in ('psi', 'theta'):
                for (name_a, name_b), value in list(fixed.items()):
                    if value == value:
                        continue
                    rank_a, rank_b = mapping[name_a], mapping[name_b]
                    if rank_a <= rank_b:
                        continue
                    fixed[name_a, name_b] = 0.0
                    self.params[name][rank_b, rank_a] *= 2
            mask, constants = _convert_indices(fixed, self.params[name].shape, mapping)
            self.masks[name] = mask
            self.fixed[name] = constants
            self.free_parameters[name] = int((~mask).sum())

    def forward(self):
        # Device-resident outputs; no host round trip per call (callers that
        # need Python values do their own device_get / block).
        loss, unstable = self._forward_fn(
            jnp.asarray(self.params['lambda_y'], jnp.float32),
            jnp.asarray(self.params['psi'], jnp.float32),
            jnp.asarray(self.params['theta'], jnp.float32))
        return loss, unstable


def _reference_loss(model):
    """Pure numpy float64 reference of SEM.forward (ML branch)."""
    def get(name):
        m = np.where(model.masks[name], model.fixed[name], model.params[name])
        if name == 'theta':
            m = np.abs(m)
        if name in ('psi', 'theta'):
            m = (m + m.T) / 2
        return m
    lam, psi, theta = get('lambda_y'), get('psi'), get('theta')
    sigma = lam @ psi @ lam.T + theta
    sigma = (sigma + sigma.T) / 2
    _, logdet = np.linalg.slogdet(sigma)
    return logdet + np.trace(model.sample_covariance @ np.linalg.inv(sigma))


# ----------------------------------------------------------------------------
# Demo
# ----------------------------------------------------------------------------
if __name__ == "__main__":
    key = jax.random.PRNGKey(0)
    n_samples, n_obs, n_lat = 32, 6, 2
    observed = [f"y{i + 1}" for i in range(n_obs)]
    latent = ["f1", "f2"]

    k_eta, k_noise = jax.random.split(key)
    true_load = jnp.array([[1.0, 0.0], [0.8, 0.0], [0.9, 0.0],
                           [0.0, 1.0], [0.0, 0.7], [0.0, 1.1]], jnp.float32)
    eta = jax.random.normal(k_eta, (n_samples, n_lat), jnp.float32)
    noise = 0.5 * jax.random.normal(k_noise, (n_samples, n_obs), jnp.float32)
    data = np.asarray(eta @ true_load.T + noise, dtype=np.float64)

    nan = float("nan")
    lambda_y_spec = {("y1", "f1"): 1.0, ("y2", "f1"): nan, ("y3", "f1"): nan,
                     ("y4", "f2"): 1.0, ("y5", "f2"): nan, ("y6", "f2"): nan}
    psi_spec = {("f1", "f1"): nan, ("f2", "f2"): nan, ("f1", "f2"): nan}

    model = SEMPallas(observed=observed, latent=latent, data=data,
                      lambda_y=lambda_y_spec, psi=psi_spec)

    loss, unstable = model.forward()
    jax.block_until_ready(loss)

    ref = _reference_loss(model)
    loss_f = float(jax.device_get(loss))
    unstable_i = int(jax.device_get(unstable))
    assert np.isfinite(loss_f), loss_f
    assert abs(loss_f - ref) <= 5e-3 * max(1.0, abs(ref)), (loss_f, ref)
    assert unstable_i == int(ref < 0)

    print("KERNEL_OK")
</pallas_src>

<mosaic_0001>
module attributes {stable_mosaic.version = 11 : i64} {
  func.func @_sem_loss_kernel(%arg0: memref<8x128xf32, #tpu.memory_space<vmem>>, %arg1: memref<128x128xf32, #tpu.memory_space<vmem>>, %arg2: memref<128x128xf32, #tpu.memory_space<vmem>>, %arg3: memref<8x128xf32, #tpu.memory_space<vmem>>, %arg4: memref<8x128xf32, #tpu.memory_space<vmem>>, %arg5: memref<1x1xf32, #tpu.memory_space<vmem>>) attributes {dimension_semantics = [], scalar_prefetch = 0 : i64, scratch_operands = 0 : i64, tpu.core_type = #tpu.core_type<tc>} {
    %c0 = arith.constant 0 : index
    %c0_0 = arith.constant 0 : index
    %0 = vector.load %arg0[%c0, %c0_0] : memref<8x128xf32, #tpu.memory_space<vmem>>, vector<8x128xf32>
    %c0_1 = arith.constant 0 : index
    %c0_2 = arith.constant 0 : index
    %1 = vector.load %arg2[%c0_1, %c0_2] : memref<128x128xf32, #tpu.memory_space<vmem>>, vector<128x128xf32>
    %cst = arith.constant dense<0.000000e+00> : vector<8x128xf32>
    %2 = tpu.matmul %0, %1, %cst {dimension_numbers = #tpu.dot_dimension_numbers<[1], [0], [0], [1], [0, 0, 1, 1], [], []>} : vector<8x128xf32>, vector<128x128xf32>, vector<8x128xf32> -> vector<8x128xf32>
    %c0_3 = arith.constant 0 : index
    %c0_4 = arith.constant 0 : index
    %3 = vector.load %arg1[%c0_3, %c0_4] : memref<128x128xf32, #tpu.memory_space<vmem>>, vector<128x128xf32>
    %cst_5 = arith.constant dense<0.000000e+00> : vector<8x128xf32>
    %4 = tpu.matmul %2, %3, %cst_5 {dimension_numbers = #tpu.dot_dimension_numbers<[1], [0], [0], [1], [0, 0, 1, 1], [], []>} : vector<8x128xf32>, vector<128x128xf32>, vector<8x128xf32> -> vector<8x128xf32>
    %c0_6 = arith.constant 0 : index
    %c0_7 = arith.constant 0 : index
    %5 = vector.load %arg3[%c0_6, %c0_7] : memref<8x128xf32, #tpu.memory_space<vmem>>, vector<8x128xf32>
    %6 = arith.addf %4, %5 : vector<8x128xf32>
    %7 = tpu.iota {dimensions = array<i32: 1>} : vector<1x128xi32>
    %8 = tpu.iota {dimensions = array<i32: 0>} : vector<8x1xi32>
    %cst_8 = arith.constant 0.000000e+00 : f32
    %9 = vector.broadcast %cst_8 : f32 to vector<1x1xf32>
    %10 = vector.extract_strided_slice %6 {offsets = [0, 0], sizes = [1, 128], strides = [1, 1]} : vector<8x128xf32> to vector<1x128xf32>
    %11 = vector.extract_strided_slice %10 {offsets = [0, 0], sizes = [1, 1], strides = [1, 1]} : vector<1x128xf32> to vector<1x1xf32>
    %12 = math.log %11 : vector<1x1xf32>
    %13 = arith.addf %9, %12 : vector<1x1xf32>
    %14 = tpu.reciprocal %11 : vector<1x1xf32> -> vector<1x1xf32>
    %c0_i32 = arith.constant 0 : i32
    %15 = vector.broadcast %c0_i32 : i32 to vector<1x128xi32>
    %16 = arith.cmpi eq, %7, %15 : vector<1x128xi32>
    %17 = vector.broadcast %14 : vector<1x1xf32> to vector<1x128xf32>
    %18 = arith.mulf %10, %17 : vector<1x128xf32>
    %19 = vector.shape_cast %14 : vector<1x1xf32> to vector<1x1xf32>
    %20 = vector.broadcast %19 : vector<1x1xf32> to vector<1x128xf32>
    %21 = arith.select %16, %20, %18 : vector<1x128xi1>, vector<1x128xf32>
    %c0_i32_9 = arith.constant 0 : i32
    %22 = vector.broadcast %c0_i32_9 : i32 to vector<8x1xi32>
    %23 = arith.cmpi eq, %8, %22 : vector<8x1xi32>
    %24 = vector.extract_strided_slice %6 {offsets = [0, 0], sizes = [8, 1], strides = [1, 1]} : vector<8x128xf32> to vector<8x1xf32>
    %cst_10 = arith.constant 0.000000e+00 : f32
    %25 = vector.broadcast %cst_10 : f32 to vector<8x1xf32>
    %26 = arith.select %23, %25, %24 : vector<8x1xi1>, vector<8x1xf32>
    %c0_i32_11 = arith.constant 0 : i32
    %27 = vector.broadcast %c0_i32_11 : i32 to vector<1x128xi32>
    %28 = arith.cmpi eq, %7, %27 : vector<1x128xi32>
    %cst_12 = arith.constant 0.000000e+00 : f32
    %29 = vector.shape_cast %28 : vector<1x128xi1> to vector<1x128xi1>
    %30 = vector.broadcast %29 : vector<1x128xi1> to vector<8x128xi1>
    %31 = vector.broadcast %cst_12 : f32 to vector<8x128xf32>
    %32 = arith.select %30, %31, %6 : vector<8x128xi1>, vector<8x128xf32>
    %33 = vector.broadcast %26 : vector<8x1xf32> to vector<8x128xf32>
    %34 = vector.broadcast %21 : vector<1x128xf32> to vector<8x128xf32>
    %35 = arith.mulf %33, %34 : vector<8x128xf32>
    %36 = arith.subf %32, %35 : vector<8x128xf32>
    %c0_i32_13 = arith.constant 0 : i32
    %37 = vector.broadcast %c0_i32_13 : i32 to vector<8x1xi32>
    %38 = arith.cmpi eq, %8, %37 : vector<8x1xi32>
    %39 = vector.shape_cast %38 : vector<8x1xi1> to vector<8x1xi1>
    %40 = vector.broadcast %39 : vector<8x1xi1> to vector<8x128xi1>
    %41 = vector.shape_cast %21 : vector<1x128xf32> to vector<1x128xf32>
    %42 = vector.broadcast %41 : vector<1x128xf32> to vector<8x128xf32>
    %43 = arith.select %40, %42, %36 : vector<8x128xi1>, vector<8x128xf32>
    %44 = vector.extract_strided_slice %43 {offsets = [1, 0], sizes = [1, 128], strides = [1, 1]} : vector<8x128xf32> to vector<1x128xf32>
    %45 = vector.extract_strided_slice %44 {offsets = [0, 1], sizes = [1, 1], strides = [1, 1]} : vector<1x128xf32> to vector<1x1xf32>
    %46 = math.log %45 : vector<1x1xf32>
    %47 = arith.addf %13, %46 : vector<1x1xf32>
    %48 = tpu.reciprocal %45 : vector<1x1xf32> -> vector<1x1xf32>
    %c1_i32 = arith.constant 1 : i32
    %49 = vector.broadcast %c1_i32 : i32 to vector<1x128xi32>
    %50 = arith.cmpi eq, %7, %49 : vector<1x128xi32>
    %51 = vector.broadcast %48 : vector<1x1xf32> to vector<1x128xf32>
    %52 = arith.mulf %44, %51 : vector<1x128xf32>
    %53 = vector.shape_cast %48 : vector<1x1xf32> to vector<1x1xf32>
    %54 = vector.broadcast %53 : vector<1x1xf32> to vector<1x128xf32>
    %55 = arith.select %50, %54, %52 : vector<1x128xi1>, vector<1x128xf32>
    %c1_i32_14 = arith.constant 1 : i32
    %56 = vector.broadcast %c1_i32_14 : i32 to vector<8x1xi32>
    %57 = arith.cmpi eq, %8, %56 : vector<8x1xi32>
    %58 = vector.extract_strided_slice %43 {offsets = [0, 1], sizes = [8, 1], strides = [1, 1]} : vector<8x128xf32> to vector<8x1xf32>
    %cst_15 = arith.constant 0.000000e+00 : f32
    %59 = vector.broadcast %cst_15 : f32 to vector<8x1xf32>
    %60 = arith.select %57, %59, %58 : vector<8x1xi1>, vector<8x1xf32>
    %c1_i32_16 = arith.constant 1 : i32
    %61 = vector.broadcast %c1_i32_16 : i32 to vector<1x128xi32>
    %62 = arith.cmpi eq, %7, %61 : vector<1x128xi32>
    %cst_17 = arith.constant 0.000000e+00 : f32
    %63 = vector.shape_cast %62 : vector<1x128xi1> to vector<1x128xi1>
    %64 = vector.broadcast %63 : vector<1x128xi1> to vector<8x128xi1>
    %65 = vector.broadcast %cst_17 : f32 to vector<8x128xf32>
    %66 = arith.select %64, %65, %43 : vector<8x128xi1>, vector<8x128xf32>
    %67 = vector.broadcast %60 : vector<8x1xf32> to vector<8x128xf32>
    %68 = vector.broadcast %55 : vector<1x128xf32> to vector<8x128xf32>
    %69 = arith.mulf %67, %68 : vector<8x128xf32>
    %70 = arith.subf %66, %69 : vector<8x128xf32>
    %c1_i32_18 = arith.constant 1 : i32
    %71 = vector.broadcast %c1_i32_18 : i32 to vector<8x1xi32>
    %72 = arith.cmpi eq, %8, %71 : vector<8x1xi32>
    %73 = vector.shape_cast %72 : vector<8x1xi1> to vector<8x1xi1>
    %74 = vector.broadcast %73 : vector<8x1xi1> to vector<8x128xi1>
    %75 = vector.shape_cast %55 : vector<1x128xf32> to vector<1x128xf32>
    %76 = vector.broadcast %75 : vector<1x128xf32> to vector<8x128xf32>
    %77 = arith.select %74, %76, %70 : vector<8x128xi1>, vector<8x128xf32>
    %78 = vector.extract_strided_slice %77 {offsets = [2, 0], sizes = [1, 128], strides = [1, 1]} : vector<8x128xf32> to vector<1x128xf32>
    %79 = vector.extract_strided_slice %78 {offsets = [0, 2], sizes = [1, 1], strides = [1, 1]} : vector<1x128xf32> to vector<1x1xf32>
    %80 = math.log %79 : vector<1x1xf32>
    %81 = arith.addf %47, %80 : vector<1x1xf32>
    %82 = tpu.reciprocal %79 : vector<1x1xf32> -> vector<1x1xf32>
    %c2_i32 = arith.constant 2 : i32
    %83 = vector.broadcast %c2_i32 : i32 to vector<1x128xi32>
    %84 = arith.cmpi eq, %7, %83 : vector<1x128xi32>
    %85 = vector.broadcast %82 : vector<1x1xf32> to vector<1x128xf32>
    %86 = arith.mulf %78, %85 : vector<1x128xf32>
    %87 = vector.shape_cast %82 : vector<1x1xf32> to vector<1x1xf32>
    %88 = vector.broadcast %87 : vector<1x1xf32> to vector<1x128xf32>
    %89 = arith.select %84, %88, %86 : vector<1x128xi1>, vector<1x128xf32>
    %c2_i32_19 = arith.constant 2 : i32
    %90 = vector.broadcast %c2_i32_19 : i32 to vector<8x1xi32>
    %91 = arith.cmpi eq, %8, %90 : vector<8x1xi32>
    %92 = vector.extract_strided_slice %77 {offsets = [0, 2], sizes = [8, 1], strides = [1, 1]} : vector<8x128xf32> to vector<8x1xf32>
    %cst_20 = arith.constant 0.000000e+00 : f32
    %93 = vector.broadcast %cst_20 : f32 to vector<8x1xf32>
    %94 = arith.select %91, %93, %92 : vector<8x1xi1>, vector<8x1xf32>
    %c2_i32_21 = arith.constant 2 : i32
    %95 = vector.broadcast %c2_i32_21 : i32 to vector<1x128xi32>
    %96 = arith.cmpi eq, %7, %95 : vector<1x128xi32>
    %cst_22 = arith.constant 0.000000e+00 : f32
    %97 = vector.shape_cast %96 : vector<1x128xi1> to vector<1x128xi1>
    %98 = vector.broadcast %97 : vector<1x128xi1> to vector<8x128xi1>
    %99 = vector.broadcast %cst_22 : f32 to vector<8x128xf32>
    %100 = arith.select %98, %99, %77 : vector<8x128xi1>, vector<8x128xf32>
    %101 = vector.broadcast %94 : vector<8x1xf32> to vector<8x128xf32>
    %102 = vector.broadcast %89 : vector<1x128xf32> to vector<8x128xf32>
    %103 = arith.mulf %101, %102 : vector<8x128xf32>
    %104 = arith.subf %100, %103 : vector<8x128xf32>
    %c2_i32_23 = arith.constant 2 : i32
    %105 = vector.broadcast %c2_i32_23 : i32 to vector<8x1xi32>
    %106 = arith.cmpi eq, %8, %105 : vector<8x1xi32>
    %107 = vector.shape_cast %106 : vector<8x1xi1> to vector<8x1xi1>
    %108 = vector.broadcast %107 : vector<8x1xi1> to vector<8x128xi1>
    %109 = vector.shape_cast %89 : vector<1x128xf32> to vector<1x128xf32>
    %110 = vector.broadcast %109 : vector<1x128xf32> to vector<8x128xf32>
    %111 = arith.select %108, %110, %104 : vector<8x128xi1>, vector<8x128xf32>
    %112 = vector.extract_strided_slice %111 {offsets = [3, 0], sizes = [1, 128], strides = [1, 1]} : vector<8x128xf32> to vector<1x128xf32>
    %113 = vector.extract_strided_slice %112 {offsets = [0, 3], sizes = [1, 1], strides = [1, 1]} : vector<1x128xf32> to vector<1x1xf32>
    %114 = math.log %113 : vector<1x1xf32>
    %115 = arith.addf %81, %114 : vector<1x1xf32>
    %116 = tpu.reciprocal %113 : vector<1x1xf32> -> vector<1x1xf32>
    %c3_i32 = arith.constant 3 : i32
    %117 = vector.broadcast %c3_i32 : i32 to vector<1x128xi32>
    %118 = arith.cmpi eq, %7, %117 : vector<1x128xi32>
    %119 = vector.broadcast %116 : vector<1x1xf32> to vector<1x128xf32>
    %120 = arith.mulf %112, %119 : vector<1x128xf32>
    %121 = vector.shape_cast %116 : vector<1x1xf32> to vector<1x1xf32>
    %122 = vector.broadcast %121 : vector<1x1xf32> to vector<1x128xf32>
    %123 = arith.select %118, %122, %120 : vector<1x128xi1>, vector<1x128xf32>
    %c3_i32_24 = arith.constant 3 : i32
    %124 = vector.broadcast %c3_i32_24 : i32 to vector<8x1xi32>
    %125 = arith.cmpi eq, %8, %124 : vector<8x1xi32>
    %126 = vector.extract_strided_slice %111 {offsets = [0, 3], sizes = [8, 1], strides = [1, 1]} : vector<8x128xf32> to vector<8x1xf32>
    %cst_25 = arith.constant 0.000000e+00 : f32
    %127 = vector.broadcast %cst_25 : f32 to vector<8x1xf32>
    %128 = arith.select %125, %127, %126 : vector<8x1xi1>, vector<8x1xf32>
    %c3_i32_26 = arith.constant 3 : i32
    %129 = vector.broadcast %c3_i32_26 : i32 to vector<1x128xi32>
    %130 = arith.cmpi eq, %7, %129 : vector<1x128xi32>
    %cst_27 = arith.constant 0.000000e+00 : f32
    %131 = vector.shape_cast %130 : vector<1x128xi1> to vector<1x128xi1>
    %132 = vector.broadcast %131 : vector<1x128xi1> to vector<8x128xi1>
    %133 = vector.broadcast %cst_27 : f32 to vector<8x128xf32>
    %134 = arith.select %132, %133, %111 : vector<8x128xi1>, vector<8x128xf32>
    %135 = vector.broadcast %128 : vector<8x1xf32> to vector<8x128xf32>
    %136 = vector.broadcast %123 : vector<1x128xf32> to vector<8x128xf32>
    %137 = arith.mulf %135, %136 : vector<8x128xf32>
    %138 = arith.subf %134, %137 : vector<8x128xf32>
    %c3_i32_28 = arith.constant 3 : i32
    %139 = vector.broadcast %c3_i32_28 : i32 to vector<8x1xi32>
    %140 = arith.cmpi eq, %8, %139 : vector<8x1xi32>
    %141 = vector.shape_cast %140 : vector<8x1xi1> to vector<8x1xi1>
    %142 = vector.broadcast %141 : vector<8x1xi1> to vector<8x128xi1>
    %143 = vector.shape_cast %123 : vector<1x128xf32> to vector<1x128xf32>
    %144 = vector.broadcast %143 : vector<1x128xf32> to vector<8x128xf32>
    %145 = arith.select %142, %144, %138 : vector<8x128xi1>, vector<8x128xf32>
    %146 = vector.extract_strided_slice %145 {offsets = [4, 0], sizes = [1, 128], strides = [1, 1]} : vector<8x128xf32> to vector<1x128xf32>
    %147 = vector.extract_strided_slice %146 {offsets = [0, 4], sizes = [1, 1], strides = [1, 1]} : vector<1x128xf32> to vector<1x1xf32>
    %148 = math.log %147 : vector<1x1xf32>
    %149 = arith.addf %115, %148 : vector<1x1xf32>
    %150 = tpu.reciprocal %147 : vector<1x1xf32> -> vector<1x1xf32>
    %c4_i32 = arith.constant 4 : i32
    %151 = vector.broadcast %c4_i32 : i32 to vector<1x128xi32>
    %152 = arith.cmpi eq, %7, %151 : vector<1x128xi32>
    %153 = vector.broadcast %150 : vector<1x1xf32> to vector<1x128xf32>
    %154 = arith.mulf %146, %153 : vector<1x128xf32>
    %155 = vector.shape_cast %150 : vector<1x1xf32> to vector<1x1xf32>
    %156 = vector.broadcast %155 : vector<1x1xf32> to vector<1x128xf32>
    %157 = arith.select %152, %156, %154 : vector<1x128xi1>, vector<1x128xf32>
    %c4_i32_29 = arith.constant 4 : i32
    %158 = vector.broadcast %c4_i32_29 : i32 to vector<8x1xi32>
    %159 = arith.cmpi eq, %8, %158 : vector<8x1xi32>
    %160 = vector.extract_strided_slice %145 {offsets = [0, 4], sizes = [8, 1], strides = [1, 1]} : vector<8x128xf32> to vector<8x1xf32>
    %cst_30 = arith.constant 0.000000e+00 : f32
    %161 = vector.broadcast %cst_30 : f32 to vector<8x1xf32>
    %162 = arith.select %159, %161, %160 : vector<8x1xi1>, vector<8x1xf32>
    %c4_i32_31 = arith.constant 4 : i32
    %163 = vector.broadcast %c4_i32_31 : i32 to vector<1x128xi32>
    %164 = arith.cmpi eq, %7, %163 : vector<1x128xi32>
    %cst_32 = arith.constant 0.000000e+00 : f32
    %165 = vector.shape_cast %164 : vector<1x128xi1> to vector<1x128xi1>
    %166 = vector.broadcast %165 : vector<1x128xi1> to vector<8x128xi1>
    %167 = vector.broadcast %cst_32 : f32 to vector<8x128xf32>
    %168 = arith.select %166, %167, %145 : vector<8x128xi1>, vector<8x128xf32>
    %169 = vector.broadcast %162 : vector<8x1xf32> to vector<8x128xf32>
    %170 = vector.broadcast %157 : vector<1x128xf32> to vector<8x128xf32>
    %171 = arith.mulf %169, %170 : vector<8x128xf32>
    %172 = arith.subf %168, %171 : vector<8x128xf32>
    %c4_i32_33 = arith.constant 4 : i32
    %173 = vector.broadcast %c4_i32_33 : i32 to vector<8x1xi32>
    %174 = arith.cmpi eq, %8, %173 : vector<8x1xi32>
    %175 = vector.shape_cast %174 : vector<8x1xi1> to vector<8x1xi1>
    %176 = vector.broadcast %175 : vector<8x1xi1> to vector<8x128xi1>
    %177 = vector.shape_cast %157 : vector<1x128xf32> to vector<1x128xf32>
    %178 = vector.broadcast %177 : vector<1x128xf32> to vector<8x128xf32>
    %179 = arith.select %176, %178, %172 : vector<8x128xi1>, vector<8x128xf32>
    %180 = vector.extract_strided_slice %179 {offsets = [5, 0], sizes = [1, 128], strides = [1, 1]} : vector<8x128xf32> to vector<1x128xf32>
    %181 = vector.extract_strided_slice %180 {offsets = [0, 5], sizes = [1, 1], strides = [1, 1]} : vector<1x128xf32> to vector<1x1xf32>
    %182 = math.log %181 : vector<1x1xf32>
    %183 = arith.addf %149, %182 : vector<1x1xf32>
    %184 = tpu.reciprocal %181 : vector<1x1xf32> -> vector<1x1xf32>
    %c5_i32 = arith.constant 5 : i32
    %185 = vector.broadcast %c5_i32 : i32 to vector<1x128xi32>
    %186 = arith.cmpi eq, %7, %185 : vector<1x128xi32>
    %187 = vector.broadcast %184 : vector<1x1xf32> to vector<1x128xf32>
    %188 = arith.mulf %180, %187 : vector<1x128xf32>
    %189 = vector.shape_cast %184 : vector<1x1xf32> to vector<1x1xf32>
    %190 = vector.broadcast %189 : vector<1x1xf32> to vector<1x128xf32>
    %191 = arith.select %186, %190, %188 : vector<1x128xi1>, vector<1x128xf32>
    %c5_i32_34 = arith.constant 5 : i32
    %192 = vector.broadcast %c5_i32_34 : i32 to vector<8x1xi32>
    %193 = arith.cmpi eq, %8, %192 : vector<8x1xi32>
    %194 = vector.extract_strided_slice %179 {offsets = [0, 5], sizes = [8, 1], strides = [1, 1]} : vector<8x128xf32> to vector<8x1xf32>
    %cst_35 = arith.constant 0.000000e+00 : f32
    %195 = vector.broadcast %cst_35 : f32 to vector<8x1xf32>
    %196 = arith.select %193, %195, %194 : vector<8x1xi1>, vector<8x1xf32>
    %c5_i32_36 = arith.constant 5 : i32
    %197 = vector.broadcast %c5_i32_36 : i32 to vector<1x128xi32>
    %198 = arith.cmpi eq, %7, %197 : vector<1x128xi32>
    %cst_37 = arith.constant 0.000000e+00 : f32
    %199 = vector.shape_cast %198 : vector<1x128xi1> to vector<1x128xi1>
    %200 = vector.broadcast %199 : vector<1x128xi1> to vector<8x128xi1>
    %201 = vector.broadcast %cst_37 : f32 to vector<8x128xf32>
    %202 = arith.select %200, %201, %179 : vector<8x128xi1>, vector<8x128xf32>
    %203 = vector.broadcast %196 : vector<8x1xf32> to vector<8x128xf32>
    %204 = vector.broadcast %191 : vector<1x128xf32> to vector<8x128xf32>
    %205 = arith.mulf %203, %204 : vector<8x128xf32>
    %206 = arith.subf %202, %205 : vector<8x128xf32>
    %c5_i32_38 = arith.constant 5 : i32
    %207 = vector.broadcast %c5_i32_38 : i32 to vector<8x1xi32>
    %208 = arith.cmpi eq, %8, %207 : vector<8x1xi32>
    %209 = vector.shape_cast %208 : vector<8x1xi1> to vector<8x1xi1>
    %210 = vector.broadcast %209 : vector<8x1xi1> to vector<8x128xi1>
    %211 = vector.shape_cast %191 : vector<1x128xf32> to vector<1x128xf32>
    %212 = vector.broadcast %211 : vector<1x128xf32> to vector<8x128xf32>
    %213 = arith.select %210, %212, %206 : vector<8x128xi1>, vector<8x128xf32>
    %c0_39 = arith.constant 0 : index
    %c0_40 = arith.constant 0 : index
    %214 = vector.load %arg4[%c0_39, %c0_40] : memref<8x128xf32, #tpu.memory_space<vmem>>, vector<8x128xf32>
    %215 = arith.mulf %214, %213 : vector<8x128xf32>
    %216 = vector.shape_cast %215 : vector<8x128xf32> to vector<1x8x128xf32>
    %cst_41 = arith.constant dense<0.000000e+00> : vector<1xf32>
    %217 = vector.multi_reduction <add>, %216, %cst_41 [1, 2] : vector<1x8x128xf32> to vector<1xf32>
    %218 = vector.shape_cast %217 : vector<1xf32> to vector<1x1x1xf32>
    %219 = vector.extract %218[0, 0, 0] : f32 from vector<1x1x1xf32>
    %220 = vector.broadcast %219 : f32 to vector<1x1xf32>
    %221 = arith.addf %183, %220 : vector<1x1xf32>
    %c0_42 = arith.constant 0 : index
    %c0_43 = arith.constant 0 : index
    %222 = vector.load %arg5[%c0_42, %c0_43] : memref<1x1xf32, #tpu.memory_space<vmem>>, vector<1x1xf32>
    tpu.vector_store %arg5[%c0_42, %c0_43], %221 {strides = array<i32>} : memref<1x1xf32, #tpu.memory_space<vmem>>, vector<1x1xf32>,
    return
  }
}

</mosaic_0001>

<llo_original>
// kernel: fwd.1
$region0: #{fwd.1}
  #allocation0 [shape = 'u32[]', space=smem, size = 0x4, offset = 0x4, fixed_abs, tag = 'smem constant byte address 0x4 - core index']
  #allocation1 [shape = 'u32[72,128]{1,0:T(1,128)}', space=vmem, size = 0x9000, scoped, tag = 'internal scratch']
  %s0 = inlined_call_operand.vmem [shape: f32[8,128], index: 0, kind: input, shape index: {}]
  %s1 = inlined_call_operand.vmem [shape: f32[128,128], index: 1, kind: input, shape index: {}]
  %s2 = inlined_call_operand.vmem [shape: f32[128,128], index: 2, kind: input, shape index: {}]
  %s3 = inlined_call_operand.vmem [shape: f32[8,128], index: 3, kind: input, shape index: {}]
  %s4 = inlined_call_operand.vmem [shape: f32[8,128], index: 4, kind: input, shape index: {}]
  %s5 = inlined_call_operand.hbm [shape: f32[1,1], index: 5, kind: output, shape index: {}]
  %s6 = sld [smem:[#allocation0]]
  $region30: #{fwd.1} parent=0
    _
  %s8 = ssub.s32 1, %s6
  %s9 = scalar_select 0, %s8, %s6
  $region1: #{fwd.1} parent=0
    #allocation2 [shape = 'u8[512]{0}', space=vmem, size = 0x400, scoped, tag = 'output window, operand 0, single buffered']
    #allocation3 [shape = 's32[1]{0}', space=sflag, size = 0x4, scoped, tag = 'scoped memory for fwd.1']
    %10 = vsyncpa [#allocation3], 0
    // Predicated region
    $region2: #{fwd.1} parent=1 // pred_check
      _
    $region3: #{fwd.1} parent=1 // pred_check_branch
      %12 = sbr.rel (0) target = $region5
    $region4: #{fwd.1} parent=1 // pred_region
      _
    $region5: #{fwd.1} parent=1 // pred_fallthru
      _
    // Predicated region
    $region6: #{fwd.1} parent=1 // pred_check
      _
    $region7: #{fwd.1} parent=1 // pred_check_branch
      %14 = sbr.rel (0) target = $region9
    $region8: #{fwd.1} parent=1 // pred_region
      _
    $region9: #{fwd.1} parent=1 // pred_fallthru
      _
    // Predicated region
    $region10: #{fwd.1} parent=1 // pred_check
      _
    $region11: #{fwd.1} parent=1 // pred_check_branch
      %16 = sbr.rel (0) target = $region13
    $region12: #{fwd.1} parent=1 // pred_region
      _
    $region13: #{fwd.1} parent=1 // pred_fallthru
      _
    // Predicated region
    $region14: #{fwd.1} parent=1 // pred_check
      _
    $region15: #{fwd.1} parent=1 // pred_check_branch
      %18 = sbr.rel (0) target = $region17
    $region16: #{fwd.1} parent=1 // pred_region
      _
    $region17: #{fwd.1} parent=1 // pred_fallthru
      _
    // Predicated region
    $region18: #{fwd.1} parent=1 // pred_check
      _
    $region19: #{fwd.1} parent=1 // pred_check_branch
      %20 = sbr.rel (0) target = $region21
    $region20: #{fwd.1} parent=1 // pred_region
      _
    $region21: #{fwd.1} parent=1 // pred_fallthru
      _
    %v21 = vld [vmem:[%s0] sm:$0xff]
    %v22 = vld [vmem:[%s2] sm:$0xff]
    %v23 = vld [vmem:[%s2 + $0x8] sm:$0xff]
    %v24 = vld [vmem:[%s2 + $0x10] sm:$0xff]
    %v25 = vld [vmem:[%s2 + $0x18] sm:$0xff]
    %v26 = vld [vmem:[%s2 + $0x20] sm:$0xff]
    %v27 = vld [vmem:[%s2 + $0x28] sm:$0xff]
    %v28 = vld [vmem:[%s2 + $0x30] sm:$0xff]
    %v29 = vld [vmem:[%s2 + $0x38] sm:$0xff]
    %v30 = vld [vmem:[%s2 + $0x40] sm:$0xff]
    %v31 = vld [vmem:[%s2 + $0x48] sm:$0xff]
    %v32 = vld [vmem:[%s2 + $0x50] sm:$0xff]
    %v33 = vld [vmem:[%s2 + $0x58] sm:$0xff]
    %v34 = vld [vmem:[%s2 + $0x60] sm:$0xff]
    %v35 = vld [vmem:[%s2 + $0x68] sm:$0xff]
    %v36 = vld [vmem:[%s2 + $0x70] sm:$0xff]
    %v37 = vld [vmem:[%s2 + $0x78] sm:$0xff]
    %38 = vmatpush.msra.mxu0 %v37
    %39 = vmatpush.msra.mxu0 %v36
    %40 = vmatpush.msra.mxu0 %v35
    %41 = vmatpush.msra.mxu0 %v34
    %42 = vmatpush.msra.mxu0 %v33
    %43 = vmatpush.msra.mxu0 %v32
    %44 = vmatpush.msra.mxu0 %v31
    %45 = vmatpush.msra.mxu0 %v30
    %46 = vmatpush.msra.mxu0 %v29
    %47 = vmatpush.msra.mxu0 %v28
    %48 = vmatpush.msra.mxu0 %v27
    %49 = vmatpush.msra.mxu0 %v26
    %50 = vmatpush.msra.mxu0 %v25
    %51 = vmatpush.msra.mxu0 %v24
    %52 = vmatpush.msra.mxu0 %v23
    %53 = vmatpush.msra.mxu0 %v22
    %54 = vmatmul.f32.gmra.mxu0 %v21
    %v55 = vpop.f32.mrf.mxu0
    %v56 = vadd.f32 0.0, %v55
    %57 = vdwg.mxu0
    %v58 = vld [vmem:[%s1] sm:$0xff]
    %v59 = vld [vmem:[%s1 + $0x8] sm:$0xff]
    %v60 = vld [vmem:[%s1 + $0x10] sm:$0xff]
    %v61 = vld [vmem:[%s1 + $0x18] sm:$0xff]
    %v62 = vld [vmem:[%s1 + $0x20] sm:$0xff]
    %v63 = vld [vmem:[%s1 + $0x28] sm:$0xff]
    %v64 = vld [vmem:[%s1 + $0x30] sm:$0xff]
    %v65 = vld [vmem:[%s1 + $0x38] sm:$0xff]
    %v66 = vld [vmem:[%s1 + $0x40] sm:$0xff]
    %v67 = vld [vmem:[%s1 + $0x48] sm:$0xff]
    %v68 = vld [vmem:[%s1 + $0x50] sm:$0xff]
    %v69 = vld [vmem:[%s1 + $0x58] sm:$0xff]
    %v70 = vld [vmem:[%s1 + $0x60] sm:$0xff]
    %v71 = vld [vmem:[%s1 + $0x68] sm:$0xff]
    %v72 = vld [vmem:[%s1 + $0x70] sm:$0xff]
    %v73 = vld [vmem:[%s1 + $0x78] sm:$0xff]
    %v74 = vld [vmem:[%s3] sm:$0xff]
    %75 = vmatpush.msra.mxu0 %v73
    %76 = vmatpush.msra.mxu0 %v72
    %77 = vmatpush.msra.mxu0 %v71
    %78 = vmatpush.msra.mxu0 %v70
    %79 = vmatpush.msra.mxu0 %v69
    %80 = vmatpush.msra.mxu0 %v68
    %81 = vmatpush.msra.mxu0 %v67
    %82 = vmatpush.msra.mxu0 %v66
    %83 = vmatpush.msra.mxu0 %v65
    %84 = vmatpush.msra.mxu0 %v64
    %85 = vmatpush.msra.mxu0 %v63
    %86 = vmatpush.msra.mxu0 %v62
    %87 = vmatpush.msra.mxu0 %v61
    %88 = vmatpush.msra.mxu0 %v60
    %89 = vmatpush.msra.mxu0 %v59
    %90 = vmatpush.msra.mxu0 %v58
    %91 = vmatmul.f32.gmra.mxu0 %v56
    %v92 = vpop.f32.mrf.mxu0
    %v93 = vadd.f32 %v74, %v92
    %94 = vdwg.mxu0
    %v95 = vlaneseq
    %v96 = vand.u32 %v95, 127
    %v97 = vlaneseq
    %v98 = vshrl.u32 %v97, 7
    %v99 = vlog2.pop %v93
    %v100 = vmul.f32 %v99, 0.6931472
    %v101 = vadd.f32 %v100, 0.0
    %v102 = vrcp.pop %v93
    %v103 = vmul.f32 %v93, %v102
    %v104 = vsub.f32 1.0, %v103
    %v105 = vmul.f32 %v102, %v104
    %v106 = vadd.f32 %v102, %v105
    %vm107 = vweird.f32 %v93
    %vm108 = vweird.f32 %v102
    %vm109 = vmor %vm107, %vm108
    %v110 = vsel %vm109, %v102, %v106
    %v111 = vand.u32 2147483647, %v93
    %vm112 = vcmp.eq.f32.partialorder %v111, 8.507059e+37
    %v113 = vand.u32 %v93, 2147483648
    %v114 = vor.u32 1.1754944e-38, %v113
    %v115 = vsel %vm112, %v114, %v110
    %vm116 = vcmp.eq.s32.totalorder %v96, 0
    %118 = vset.pattern.permute.xlu0 0
    %119 = vperm.xlu0 %118, %v115
    %v120 = vpop.permute.xlu0 %119
    %v122 = vmul.f32 %v93, %v120
    %v123 = vsel %vm116, %v120, %v122
    %vm124 = vcmp.eq.s32.totalorder %v98, 0
    %v125 = vsel %vm124, 0.0, %v93
    %v126 = vsel %vm116, 1, 0
    %vm127 = vcmp.eq.s32.totalorder %v126, 1
    %v128 = vsel %vm127, 0.0, %v93
    %130 = vset.pattern.permute.xlu0 0
    %131 = vperm.xlu0 %130, %v125
    %v132 = vpop.permute.xlu0 %131
    %v134 = vperm.slane %v123, 0
    %v135 = vmul.f32 %v132, %v134
    %v136 = vsub.f32 %v128, %v135
    %v137 = vsel %vm124, 1, 0
    %vm138 = vcmp.eq.s32.totalorder %v137, 1
    %v139 = vsel %vm138, %v134, %v136
    %v140 = vlog2.pop %v139
    %v141 = vmul.f32 %v140, 0.6931472
    %v143 = vrot.slane %v141, 1
    %144 = vrot.lane.b32.xlu0 %v143, 127
    %v145 = vpop.permute.xlu0 %144
    %v147 = vadd.f32 %v101, %v145
    %v148 = vrcp.pop %v139
    %v149 = vmul.f32 %v139, %v148
    %v150 = vsub.f32 1.0, %v149
    %v151 = vmul.f32 %v148, %v150
    %v152 = vadd.f32 %v148, %v151
    %vm153 = vweird.f32 %v139
    %vm154 = vweird.f32 %v148
    %vm155 = vmor %vm153, %vm154
    %v156 = vsel %vm155, %v148, %v152
    %v157 = vand.u32 2147483647, %v139
    %vm158 = vcmp.eq.f32.partialorder %v157, 8.507059e+37
    %v159 = vand.u32 %v139, 2147483648
    %v160 = vor.u32 1.1754944e-38, %v159
    %v161 = vsel %vm158, %v160, %v156
    %vm162 = vcmp.eq.s32.totalorder %v96, 1
    %164 = vset.pattern.permute.xlu0 1
    %165 = vperm.xlu0 %164, %v161
    %v166 = vpop.permute.xlu0 %165
    %v168 = vmul.f32 %v139, %v166
    %v169 = vsel %vm162, %v166, %v168
    %vm170 = vcmp.eq.s32.totalorder %v98, 1
    %v171 = vsel %vm170, 0.0, %v139
    %v172 = vsel %vm162, 1, 0
    %vm173 = vcmp.eq.s32.totalorder %v172, 1
    %v174 = vsel %vm173, 0.0, %v139
    %176 = vset.pattern.permute.xlu0 1
    %177 = vperm.xlu0 %176, %v171
    %v178 = vpop.permute.xlu0 %177
    %v180 = vperm.slane %v169, 1
    %v181 = vmul.f32 %v178, %v180
    %v182 = vsub.f32 %v174, %v181
    %v183 = vsel %vm170, 1, 0
    %vm184 = vcmp.eq.s32.totalorder %v183, 1
    %v185 = vsel %vm184, %v180, %v182
    %v186 = vlog2.pop %v185
    %v187 = vmul.f32 %v186, 0.6931472
    %v189 = vrot.slane %v187, 2
    %190 = vrot.lane.b32.xlu0 %v189, 126
    %v191 = vpop.permute.xlu0 %190
    %v193 = vadd.f32 %v147, %v191
    %v194 = vrcp.pop %v185
    %v195 = vmul.f32 %v185, %v194
    %v196 = vsub.f32 1.0, %v195
    %v197 = vmul.f32 %v194, %v196
    %v198 = vadd.f32 %v194, %v197
    %vm199 = vweird.f32 %v185
    %vm200 = vweird.f32 %v194
    %vm201 = vmor %vm199, %vm200
    %v202 = vsel %vm201, %v194, %v198
    %v203 = vand.u32 2147483647, %v185
    %vm204 = vcmp.eq.f32.partialorder %v203, 8.507059e+37
    %v205 = vand.u32 %v185, 2147483648
    %v206 = vor.u32 1.1754944e-38, %v205
    %v207 = vsel %vm204, %v206, %v202
    %vm208 = vcmp.eq.s32.totalorder %v96, 2
    %210 = vset.pattern.permute.xlu0 2
    %211 = vperm.xlu0 %210, %v207
    %v212 = vpop.permute.xlu0 %211
    %v214 = vmul.f32 %v185, %v212
    %v215 = vsel %vm208, %v212, %v214
    %vm216 = vcmp.eq.s32.totalorder %v98, 2
    %v217 = vsel %vm216, 0.0, %v185
    %v218 = vsel %vm208, 1, 0
    %vm219 = vcmp.eq.s32.totalorder %v218, 1
    %v220 = vsel %vm219, 0.0, %v185
    %222 = vset.pattern.permute.xlu0 2
    %223 = vperm.xlu0 %222, %v217
    %v224 = vpop.permute.xlu0 %223
    %v226 = vperm.slane %v215, 2
    %v227 = vmul.f32 %v224, %v226
    %v228 = vsub.f32 %v220, %v227
    %v229 = vsel %vm216, 1, 0
    %vm230 = vcmp.eq.s32.totalorder %v229, 1
    %v231 = vsel %vm230, %v226, %v228
    %v232 = vlog2.pop %v231
    %v233 = vmul.f32 %v232, 0.6931472
    %v235 = vrot.slane %v233, 3
    %236 = vrot.lane.b32.xlu0 %v235, 125
    %v237 = vpop.permute.xlu0 %236
    %v239 = vadd.f32 %v193, %v237
    %v240 = vrcp.pop %v231
    %v241 = vmul.f32 %v231, %v240
    %v242 = vsub.f32 1.0, %v241
    %v243 = vmul.f32 %v240, %v242
    %v244 = vadd.f32 %v240, %v243
    %vm245 = vweird.f32 %v231
    %vm246 = vweird.f32 %v240
    %vm247 = vmor %vm245, %vm246
    %v248 = vsel %vm247, %v240, %v244
    %v249 = vand.u32 2147483647, %v231
    %vm250 = vcmp.eq.f32.partialorder %v249, 8.507059e+37
    %v251 = vand.u32 %v231, 2147483648
    %v252 = vor.u32 1.1754944e-38, %v251
    %v253 = vsel %vm250, %v252, %v248
    %vm254 = vcmp.eq.s32.totalorder %v96, 3
    %256 = vset.pattern.permute.xlu0 3
    %257 = vperm.xlu0 %256, %v253
    %v258 = vpop.permute.xlu0 %257
    %v260 = vmul.f32 %v231, %v258
    %v261 = vsel %vm254, %v258, %v260
    %vm262 = vcmp.eq.s32.totalorder %v98, 3
    %v263 = vsel %vm262, 0.0, %v231
    %v264 = vsel %vm254, 1, 0
    %vm265 = vcmp.eq.s32.totalorder %v264, 1
    %v266 = vsel %vm265, 0.0, %v231
    %268 = vset.pattern.permute.xlu0 3
    %269 = vperm.xlu0 %268, %v263
    %v270 = vpop.permute.xlu0 %269
    %v272 = vperm.slane %v261, 3
    %v273 = vmul.f32 %v270, %v272
    %v274 = vsub.f32 %v266, %v273
    %v275 = vsel %vm262, 1, 0
    %vm276 = vcmp.eq.s32.totalorder %v275, 1
    %v277 = vsel %vm276, %v272, %v274
    %v278 = vlog2.pop %v277
    %v279 = vmul.f32 %v278, 0.6931472
    %v281 = vrot.slane %v279, 4
    %282 = vrot.lane.b32.xlu0 %v281, 124
    %v283 = vpop.permute.xlu0 %282
    %v285 = vadd.f32 %v239, %v283
    %v286 = vrcp.pop %v277
    %v287 = vmul.f32 %v277, %v286
    %v288 = vsub.f32 1.0, %v287
    %v289 = vmul.f32 %v286, %v288
    %v290 = vadd.f32 %v286, %v289
    %vm291 = vweird.f32 %v277
    %vm292 = vweird.f32 %v286
    %vm293 = vmor %vm291, %vm292
    %v294 = vsel %vm293, %v286, %v290
    %v295 = vand.u32 2147483647, %v277
    %vm296 = vcmp.eq.f32.partialorder %v295, 8.507059e+37
    %v297 = vand.u32 %v277, 2147483648
    %v298 = vor.u32 1.1754944e-38, %v297
    %v299 = vsel %vm296, %v298, %v294
    %vm300 = vcmp.eq.s32.totalorder %v96, 4
    %302 = vset.pattern.permute.xlu0 4
    %303 = vperm.xlu0 %302, %v299
    %v304 = vpop.permute.xlu0 %303
    %v306 = vmul.f32 %v277, %v304
    %v307 = vsel %vm300, %v304, %v306
    %vm308 = vcmp.eq.s32.totalorder %v98, 4
    %v309 = vsel %vm308, 0.0, %v277
    %v310 = vsel %vm300, 1, 0
    %vm311 = vcmp.eq.s32.totalorder %v310, 1
    %v312 = vsel %vm311, 0.0, %v277
    %314 = vset.pattern.permute.xlu0 4
    %315 = vperm.xlu0 %314, %v309
    %v316 = vpop.permute.xlu0 %315
    %v318 = vperm.slane %v307, 4
    %v319 = vmul.f32 %v316, %v318
    %v320 = vsub.f32 %v312, %v319
    %v321 = vsel %vm308, 1, 0
    %vm322 = vcmp.eq.s32.totalorder %v321, 1
    %v323 = vsel %vm322, %v318, %v320
    %v324 = vlog2.pop %v323
    %v325 = vmul.f32 %v324, 0.6931472
    %v327 = vrot.slane %v325, 5
    %328 = vrot.lane.b32.xlu0 %v327, 123
    %v329 = vpop.permute.xlu0 %328
    %v331 = vadd.f32 %v285, %v329
    %v332 = vrcp.pop %v323
    %v333 = vmul.f32 %v323, %v332
    %v334 = vsub.f32 1.0, %v333
    %v335 = vmul.f32 %v332, %v334
    %v336 = vadd.f32 %v332, %v335
    %vm337 = vweird.f32 %v323
    %vm338 = vweird.f32 %v332
    %vm339 = vmor %vm337, %vm338
    %v340 = vsel %vm339, %v332, %v336
    %v341 = vand.u32 2147483647, %v323
    %vm342 = vcmp.eq.f32.partialorder %v341, 8.507059e+37
    %v343 = vand.u32 %v323, 2147483648
    %v344 = vor.u32 1.1754944e-38, %v343
    %v345 = vsel %vm342, %v344, %v340
    %vm346 = vcmp.eq.s32.totalorder %v96, 5
    %348 = vset.pattern.permute.xlu0 5
    %349 = vperm.xlu0 %348, %v345
    %v350 = vpop.permute.xlu0 %349
    %v352 = vmul.f32 %v323, %v350
    %v353 = vsel %vm346, %v350, %v352
    %vm354 = vcmp.eq.s32.totalorder %v98, 5
    %v355 = vsel %vm354, 0.0, %v323
    %v356 = vsel %vm346, 1, 0
    %vm357 = vcmp.eq.s32.totalorder %v356, 1
    %v358 = vsel %vm357, 0.0, %v323
    %360 = vset.pattern.permute.xlu0 5
    %361 = vperm.xlu0 %360, %v355
    %v362 = vpop.permute.xlu0 %361
    %v364 = vperm.slane %v353, 5
    %v365 = vmul.f32 %v362, %v364
    %v366 = vsub.f32 %v358, %v365
    %v367 = vsel %vm354, 1, 0
    %vm368 = vcmp.eq.s32.totalorder %v367, 1
    %v369 = vsel %vm368, %v364, %v366
    %v370 = vld [vmem:[%s4] sm:$0xff]
    %v371 = vmul.f32 %v370, %v369
    %372 = vadd.xlane.f32.xlu0 %v371
    %v373 = vpop.xlane.xlu0 %372
    %v374 = vrot.slane %v373, 4
    %v375 = vadd.f32 %v373, %v374
    %v376 = vrot.slane %v375, 2
    %v377 = vadd.f32 %v375, %v376
    %v378 = vrot.slane %v377, 1
    %v379 = vadd.f32 %v377, %v378
    %s380 = vtos %v379
    %v381 = vstv %s380
    %v382 = vadd.f32 %v331, %v381
    %vm383 = vcmask 0
    %384 = vst.msk [vmem:[#allocation2] sm:$0x1] %vm383, %v382
    // Predicated region
    $region22: #{fwd.1} parent=1 // pred_check
      _
    $region23: #{fwd.1} parent=1 // pred_check_branch
      %386 = sbr.rel (0) target = $region25
    $region24: #{fwd.1} parent=1 // pred_region
      %388 = vsyncadd [#allocation3], 0
      %s390 = sshll.u32 [#allocation2], 4
      %s391 = int_to_ptr.vmem [resolvable:$true] %s390
      %s392 = sshll.u32 %s5, 4
      %s393 = int_to_ptr.hbm [resolvable:$true] %s392
      %395 = dma.vmem_to_hbm [thread:$0]  %s391, 16, %s393, [#allocation3]
    $region25: #{fwd.1} parent=1 // pred_fallthru
      _
    // Predicated region
    $region26: #{fwd.1} parent=1 // pred_check
      _
    $region27: #{fwd.1} parent=1 // pred_check_branch
      %397 = sbr.rel (0) target = $region29
    $region28: #{fwd.1} parent=1 // pred_region
      %399 = dma.done [#allocation3], 16
    $region29: #{fwd.1} parent=1 // pred_fallthru
      _
    %400 = vsyncpa [#allocation3], 1

</llo_original>
